<compile_context>
chip_gen: v7x
topology: tpu7x:2x2x1
jax: 0.10.0
libtpu: 0.0.40
codegen_flags: <defaults>
</compile_context>

<pallas_src>
import functools

import jax
import jax.numpy as jnp
from jax.experimental import pallas as pl
from jax.experimental.pallas import tpu as pltpu


def _round_up(x: int, m: int) -> int:
    return ((x + m - 1) // m) * m


def _svm_kernel(x_ref, w_ref, b_ref, o_ref, acc_ref, *, tk, d_rem):
    # x_ref  : (TM, TK) VMEM tile of x (edge blocks may contain garbage).
    # w_ref  : (1, D_pad) VMEM, fully resident (constant index map).
    # b_ref  : (1,) SMEM scalar bias.
    # o_ref  : (TM, 1) VMEM output tile, resident across the K axis.
    # acc_ref: (TM, 128) f32 VMEM lane-dense accumulator.
    k = pl.program_id(1)
    nk = pl.num_programs(1)
    n_chunks = tk // 128

    @pl.when(k == 0)
    def _init():
        acc_ref[...] = jnp.zeros_like(acc_ref)

    # One aligned dynamic slice of the resident weight row per K step.
    w_tile = w_ref[:, pl.ds(pl.multiple_of(k * tk, tk), tk)]  # (1, TK)

    def _chunk(c):
        # (TM, 128) product of one 128-lane chunk; keeps temporaries small.
        return x_ref[:, c * 128:(c + 1) * 128] * w_tile[:, c * 128:(c + 1) * 128]

    def _accum_full():
        acc = acc_ref[...]
        for c in range(n_chunks):
            acc = acc + _chunk(c)
        acc_ref[...] = acc

    if d_rem == 0:
        # D divides TK: every K tile is full.
        _accum_full()
    else:
        @pl.when(k < nk - 1)
        def _body():
            _accum_full()

        @pl.when(k == nk - 1)
        def _tail():
            # Last K tile: only d_rem lanes are valid.  Mask the undefined tail
            # lanes BEFORE reducing (edge-block contents are undefined).
            acc = acc_ref[...]
            n_full = d_rem // 128
            for c in range(n_full):
                acc = acc + _chunk(c)
            rem = d_rem % 128
            if rem:
                lane = jax.lax.broadcasted_iota(
                    jnp.int32, (acc_ref.shape[0], 128), 1)
                acc = acc + jnp.where(lane < rem, _chunk(n_full), 0.0)
            acc_ref[...] = acc

    @pl.when(k == nk - 1)
    def _finalize():
        # Single cross-lane reduction per batch tile + bias add.
        row = jnp.sum(acc_ref[...], axis=-1, keepdims=True) + b_ref[0]
        o_ref[...] = row.astype(o_ref.dtype)


def svm_forward(x, weight, bias, *, tm=1024, tk=2048):
    """Pallas equivalent of nn.Linear(input_dim, 1) forward.

    x:      (B, D) float32
    weight: (1, D) float32  (torch Linear layout: (out_features, in_features))
    bias:   (1,)   float32
    returns (B, 1) float32
    """
    B, D = x.shape
    x = x.astype(jnp.float32)
    weight = weight.reshape(1, D).astype(jnp.float32)
    b1 = bias.reshape(1).astype(jnp.float32)

    # Tile sizes: sublane/lane aligned, never larger than needed.
    tm = min(tm, _round_up(B, 8))
    tk = min(tk, _round_up(D, 128))
    # v7x megacore: guarantee >= 2 batch tiles (when the batch allows) so the
    # "parallel" axis can split across both TensorCores sharing chip HBM.
    if _round_up(B, 8) >= 16 and pl.cdiv(B, tm) < 2:
        tm = max(8, _round_up(pl.cdiv(B, 2), 8))

    n_b = pl.cdiv(B, tm)
    n_k = pl.cdiv(D, tk)
    d_rem = D % tk  # valid lanes of the last K tile (0 => tile is full)

    # Only the tiny (1, D) weight is padded (so the in-kernel K-tile slice of
    # the resident weight stays in bounds).  x streams UNPADDED from HBM.
    d_pad = n_k * tk
    if d_pad != D:
        weight = jnp.pad(weight, ((0, 0), (0, d_pad - D)))

    kernel = functools.partial(_svm_kernel, tk=tk, d_rem=d_rem)

    out = pl.pallas_call(
        kernel,
        out_shape=jax.ShapeDtypeStruct((B, 1), jnp.float32),
        grid_spec=pltpu.PrefetchScalarGridSpec(
            num_scalar_prefetch=0,
            grid=(n_b, n_k),
            in_specs=[
                # x tiles stream through VMEM, double-buffered by the pipeline.
                pl.BlockSpec((tm, tk), lambda i, k: (i, k)),
                # weight: fully VMEM-resident, one DMA total.
                pl.BlockSpec((1, d_pad), lambda i, k: (0, 0)),
                # bias: scalar in SMEM.
                pl.BlockSpec(memory_space=pltpu.MemorySpace.SMEM),
            ],
            # Same output block across the K axis -> accumulator-resident.
            out_specs=pl.BlockSpec((tm, 1), lambda i, k: (i, 0)),
            scratch_shapes=[pltpu.VMEM((tm, 128), jnp.float32)],
        ),
        compiler_params=pltpu.CompilerParams(
            # Batch axis parallel (megacore shardable), reduction axis last.
            dimension_semantics=("parallel", "arbitrary"),
            # ~17 MiB actual footprint at TM=1024, TK=2048; 48 MiB cap leaves
            # headroom on v5e/v6e (128 MiB) and stays under v7x's 64 MiB/TC.
            vmem_limit_bytes=48 * 1024 * 1024,
        ),
    )(x, weight, b1)

    return out


if __name__ == "__main__":
    # Small shapes consistent with the module: batch=8, input_dim=32.
    B, D = 8, 32
    key = jax.random.PRNGKey(0)
    kx, kw, kb = jax.random.split(key, 3)

    x = jax.random.normal(kx, (B, D), dtype=jnp.float32)
    # Deterministic init mimicking nn.Linear's uniform(-1/sqrt(D), 1/sqrt(D)).
    bound = 1.0 / jnp.sqrt(jnp.float32(D))
    weight = jax.random.uniform(kw, (1, D), minval=-bound, maxval=bound,
                                dtype=jnp.float32)
    bias = jax.random.uniform(kb, (1,), minval=-bound, maxval=bound,
                              dtype=jnp.float32)

    out = svm_forward(x, weight, bias)
    jax.block_until_ready(out)

    # Correctness check against plain JAX reference (same math as torch Linear).
    ref = x @ weight.T + bias
    assert out.shape == (B, 1)
    assert jnp.allclose(out, ref, atol=1e-5, rtol=1e-5)

    print("KERNEL_OK")
</pallas_src>

<mosaic_0001>
module attributes {stable_mosaic.version = 11 : i64} {
  func.func @_svm_kernel(%arg0: i32, %arg1: i32, %arg2: memref<8x128xf32, #tpu.memory_space<vmem>>, %arg3: memref<1x128xf32, #tpu.memory_space<vmem>>, %arg4: memref<1xf32, #tpu.memory_space<smem>>, %arg5: memref<8x1xf32, #tpu.memory_space<vmem>>, %arg6: memref<8x128xf32, #tpu.memory_space<vmem>>) attributes {dimension_semantics = [#tpu.dimension_semantics<parallel>, #tpu.dimension_semantics<arbitrary>], iteration_bounds = array<i64: 1, 1>, scalar_prefetch = 0 : i64, scratch_operands = 1 : i64, tpu.core_type = #tpu.core_type<tc>, window_params = [{transform_indices = @transform_0, window_bounds = array<i64: 8, 128>}, {pipeline_mode = #tpu.pipeline_mode<synchronous>, transform_indices = @transform_1, window_bounds = array<i64: 1, 128>}, {transform_indices = @transform_2, window_bounds = array<i64: 1>}, {transform_indices = @transform_3, window_bounds = array<i64: 8, 1>}]} {
    %c0_i32 = arith.constant 0 : i32
    %0 = arith.cmpi eq, %arg1, %c0_i32 : i32
    %1 = arith.extui %0 : i1 to i32
    %c0_i32_0 = arith.constant 0 : i32
    %2 = arith.cmpi ne, %1, %c0_i32_0 : i32
    scf.if %2 {
      %cst = arith.constant 0.000000e+00 : f32
      %16 = vector.broadcast %cst : f32 to vector<8x128xf32>
      %c0_7 = arith.constant 0 : index
      %c0_8 = arith.constant 0 : index
      %17 = vector.load %arg6[%c0_7, %c0_8] : memref<8x128xf32, #tpu.memory_space<vmem>>, vector<8x128xf32>
      tpu.vector_store %arg6[%c0_7, %c0_8], %16 {strides = array<i32>} : memref<8x128xf32, #tpu.memory_space<vmem>>, vector<8x128xf32>,
    } else {
    }
    %c128_i32 = arith.constant 128 : i32
    %3 = arith.muli %arg1, %c128_i32 : i32
    %4 = tpu.assume_multiple %3, 128 : i32
    %c0 = arith.constant 0 : index
    %5 = arith.index_cast %4 : i32 to index
    %6 = vector.load %arg3[%c0, %5] : memref<1x128xf32, #tpu.memory_space<vmem>>, vector<1x128xf32>
    %c0_i32_1 = arith.constant 0 : i32
    %7 = arith.cmpi slt, %arg1, %c0_i32_1 : i32
    %8 = arith.extui %7 : i1 to i32
    %c0_i32_2 = arith.constant 0 : i32
    %9 = arith.cmpi ne, %8, %c0_i32_2 : i32
    scf.if %9 {
      %c0_7 = arith.constant 0 : index
      %c0_8 = arith.constant 0 : index
      %16 = vector.load %arg6[%c0_7, %c0_8] : memref<8x128xf32, #tpu.memory_space<vmem>>, vector<8x128xf32>
      %c0_9 = arith.constant 0 : index
      %c0_10 = arith.constant 0 : index
      %17 = vector.load %arg2[%c0_9, %c0_10] : memref<8x128xf32, #tpu.memory_space<vmem>>, vector<8x128xf32>
      %18 = vector.broadcast %6 : vector<1x128xf32> to vector<8x128xf32>
      %19 = arith.mulf %17, %18 : vector<8x128xf32>
      %20 = arith.addf %16, %19 : vector<8x128xf32>
      %c0_11 = arith.constant 0 : index
      %c0_12 = arith.constant 0 : index
      %21 = vector.load %arg6[%c0_11, %c0_12] : memref<8x128xf32, #tpu.memory_space<vmem>>, vector<8x128xf32>
      tpu.vector_store %arg6[%c0_11, %c0_12], %20 {strides = array<i32>} : memref<8x128xf32, #tpu.memory_space<vmem>>, vector<8x128xf32>,
    } else {
    }
    %c0_i32_3 = arith.constant 0 : i32
    %10 = arith.cmpi eq, %arg1, %c0_i32_3 : i32
    %11 = arith.extui %10 : i1 to i32
    %c0_i32_4 = arith.constant 0 : i32
    %12 = arith.cmpi ne, %11, %c0_i32_4 : i32
    scf.if %12 {
      %c0_7 = arith.constant 0 : index
      %c0_8 = arith.constant 0 : index
      %16 = vector.load %arg6[%c0_7, %c0_8] : memref<8x128xf32, #tpu.memory_space<vmem>>, vector<8x128xf32>
      %17 = tpu.iota {dimensions = array<i32: 1>} : vector<8x128xi32>
      %c32_i32 = arith.constant 32 : i32
      %18 = vector.broadcast %c32_i32 : i32 to vector<8x128xi32>
      %19 = arith.cmpi slt, %17, %18 : vector<8x128xi32>
      %c0_9 = arith.constant 0 : index
      %c0_10 = arith.constant 0 : index
      %20 = vector.load %arg2[%c0_9, %c0_10] : memref<8x128xf32, #tpu.memory_space<vmem>>, vector<8x128xf32>
      %21 = vector.broadcast %6 : vector<1x128xf32> to vector<8x128xf32>
      %22 = arith.mulf %20, %21 : vector<8x128xf32>
      %cst = arith.constant 0.000000e+00 : f32
      %23 = vector.broadcast %cst : f32 to vector<8x128xf32>
      %24 = arith.select %19, %22, %23 : vector<8x128xi1>, vector<8x128xf32>
      %25 = arith.addf %16, %24 : vector<8x128xf32>
      %c0_11 = arith.constant 0 : index
      %c0_12 = arith.constant 0 : index
      %26 = vector.load %arg6[%c0_11, %c0_12] : memref<8x128xf32, #tpu.memory_space<vmem>>, vector<8x128xf32>
      tpu.vector_store %arg6[%c0_11, %c0_12], %25 {strides = array<i32>} : memref<8x128xf32, #tpu.memory_space<vmem>>, vector<8x128xf32>,
    } else {
    }
    %c0_i32_5 = arith.constant 0 : i32
    %13 = arith.cmpi eq, %arg1, %c0_i32_5 : i32
    %14 = arith.extui %13 : i1 to i32
    %c0_i32_6 = arith.constant 0 : i32
    %15 = arith.cmpi ne, %14, %c0_i32_6 : i32
    scf.if %15 {
      %c0_7 = arith.constant 0 : index
      %c0_8 = arith.constant 0 : index
      %16 = vector.load %arg6[%c0_7, %c0_8] : memref<8x128xf32, #tpu.memory_space<vmem>>, vector<8x128xf32>
      %cst = arith.constant dense<0.000000e+00> : vector<8xf32>
      %17 = vector.multi_reduction <add>, %16, %cst [1] : vector<8x128xf32> to vector<8xf32>
      %18 = vector.shape_cast %17 : vector<8xf32> to vector<8x1xf32>
      %c0_9 = arith.constant 0 : index
      %19 = memref.load %arg4[%c0_9] : memref<1xf32, #tpu.memory_space<smem>>
      %20 = vector.broadcast %19 : f32 to vector<8x1xf32>
      %21 = arith.addf %18, %20 : vector<8x1xf32>
      %c0_10 = arith.constant 0 : index
      %c0_11 = arith.constant 0 : index
      %22 = vector.load %arg5[%c0_10, %c0_11] : memref<8x1xf32, #tpu.memory_space<vmem>>, vector<8x1xf32>
      tpu.vector_store %arg5[%c0_10, %c0_11], %21 {strides = array<i32>} : memref<8x1xf32, #tpu.memory_space<vmem>>, vector<8x1xf32>,
    } else {
    }
    return
  }
  func.func @transform_0(%arg0: i32, %arg1: i32) -> (i32, i32) {
    %c0_i32 = arith.constant 0 : i32
    return %arg0, %arg1 : i32, i32
  }
  func.func @transform_1(%arg0: i32, %arg1: i32) -> (i32, i32) {
    %c0_i32 = arith.constant 0 : i32
    %c0_i32_0 = arith.constant 0 : i32
    %c0_i32_1 = arith.constant 0 : i32
    return %c0_i32, %c0_i32_0 : i32, i32
  }
  func.func @transform_2(%arg0: i32, %arg1: i32) -> i32 {
    %c0_i32 = arith.constant 0 : i32
    %c0_i32_0 = arith.constant 0 : i32
    return %c0_i32 : i32
  }
  func.func @transform_3(%arg0: i32, %arg1: i32) -> (i32, i32) {
    %c0_i32 = arith.constant 0 : i32
    %c0_i32_0 = arith.constant 0 : i32
    return %arg0, %c0_i32 : i32, i32
  }
}

</mosaic_0001>

<llo_original>
// kernel: tpu_custom_call.1
$region0: #{tpu_custom_call.1}
  #allocation0 [shape = 'u32[]', space=smem, size = 0x4, offset = 0x4, fixed_abs, tag = 'smem constant byte address 0x4 - core index']
  #allocation1 [shape = 'u32[144,128]{1,0:T(1,128)}', space=vmem, size = 0x12000, scoped, tag = 'internal scratch']
  #allocation2 [shape = 'f32[8,128]{1,0:T(8,128)}', space=vmem, size = 0x1000, scoped, tag = 'scratch operand']
  #allocation3 [shape = 'f32[1]{0:T(128)S(6)}', space=smem, size = 0x200, scoped, tag = 'scoped memory for tpu_custom_call.1']
  %s0 = inlined_call_operand.hbm [shape: f32[8,32], index: 0, kind: input, shape index: {}]
  %s1 = inlined_call_operand.vmem [shape: f32[1,128], index: 1, kind: input, shape index: {}]
  %s2 = inlined_call_operand.<no memory space> [shape: f32[1], index: 2, kind: input, shape index: {}]
  %s3 = inlined_call_operand.vmem [shape: f32[8,1], index: 3, kind: output, shape index: {}]
  %s4 = sld [smem:[#allocation0]]
  $region38: #{tpu_custom_call.1} parent=0
    _
  %s6 = ssub.s32 1, %s4
  %s7 = scalar_select 0, %s6, %s4
  %8 = sst [smem:[#allocation3]] %s2
  $region1: #{tpu_custom_call.1} parent=0
    #allocation4 [shape = 'u8[4096]{0}', space=vmem, size = 0x1000, scoped, tag = 'input window, operand 0, single buffered']
    #allocation5 [shape = 's32[1]{0}', space=sflag, size = 0x4, scoped, tag = 'scoped memory for tpu_custom_call.1']
    %9 = vsyncpa [#allocation5], 0
    // Predicated region
    $region2: #{tpu_custom_call.1} parent=1 // pred_check
      _
    $region3: #{tpu_custom_call.1} parent=1 // pred_check_branch
      %11 = sbr.rel (0) target = $region5
    $region4: #{tpu_custom_call.1} parent=1 // pred_region
      %s13 = ssub.s32 128, 128
      %14 = vsyncadd [#allocation5], %s13
      %s16 = sshll.u32 [#allocation4], 4
      %s17 = int_to_ptr.vmem [resolvable:$true] %s16
      %19 = dma.hbm_to_vmem [thread:$0]  %s0, 128, %s17, [#allocation5]
    $region5: #{tpu_custom_call.1} parent=1 // pred_fallthru
      _
    // Predicated region
    $region6: #{tpu_custom_call.1} parent=1 // pred_check
      _
    $region7: #{tpu_custom_call.1} parent=1 // pred_check_branch
      %21 = sbr.rel (0) target = $region9
    $region8: #{tpu_custom_call.1} parent=1 // pred_region
      _
    $region9: #{tpu_custom_call.1} parent=1 // pred_fallthru
      _
    // Predicated region
    $region10: #{tpu_custom_call.1} parent=1 // pred_check
      _
    $region11: #{tpu_custom_call.1} parent=1 // pred_check_branch
      %23 = sbr.rel (0) target = $region13
    $region12: #{tpu_custom_call.1} parent=1 // pred_region
      _
    $region13: #{tpu_custom_call.1} parent=1 // pred_fallthru
      _
    // Predicated region
    $region14: #{tpu_custom_call.1} parent=1 // pred_check
      _
    $region15: #{tpu_custom_call.1} parent=1 // pred_check_branch
      %25 = sbr.rel (0) target = $region17
    $region16: #{tpu_custom_call.1} parent=1 // pred_region
      %26 = dma.done [#allocation5], 128
    $region17: #{tpu_custom_call.1} parent=1 // pred_fallthru
      _
    %p27 = scmp.eq.s32.totalorder 0, 0
    // Predicated region
    $region18: #{tpu_custom_call.1} parent=1 // pred_check
      %p28 = pneg %p27
    $region19: #{tpu_custom_call.1} parent=1 // pred_check_branch
      %30 = sbr.rel (%p28) target = $region21
    $region20: #{tpu_custom_call.1} parent=1 // pred_region
      %31 = vst [vmem:[#allocation2] sm:$0xff] 0.0
    $region21: #{tpu_custom_call.1} parent=1 // pred_fallthru
      _
    %s32 = smul.u32 0, 128
    %s33 = sshra.s32 %s32, 7
    %s34 = sand.u32 %s32, 127
    %s35 = scalar_lea.vmem %s1, %s33
    %v36 = vld [vmem:[%s35] sm:$0x1]
    %p37 = scmp.lt.s32.totalorder 0, 0
    // Predicated region
    $region22: #{tpu_custom_call.1} parent=1 // pred_check
      %p38 = pneg %p37
    $region23: #{tpu_custom_call.1} parent=1 // pred_check_branch
      %40 = sbr.rel (%p38) target = $region25
    $region24: #{tpu_custom_call.1} parent=1 // pred_region
      %v41 = vld [vmem:[#allocation2] sm:$0xff]
      %v42 = vld [vmem:[#allocation4] sm:$0xff]
      %v44 = vlaneseq
      %v45 = vshrl.u32 %v44, 7
      %v46 = vsub.s32 0, %v45
      %v47 = vrot.slane %v36, %v46
      %v49 = vmul.f32 %v42, %v47
      %v50 = vadd.f32 %v41, %v49
      %51 = vst [vmem:[#allocation2] sm:$0xff] %v50
    $region25: #{tpu_custom_call.1} parent=1 // pred_fallthru
      _
    // Predicated region
    $region26: #{tpu_custom_call.1} parent=1 // pred_check
      %p52 = pneg %p27
    $region27: #{tpu_custom_call.1} parent=1 // pred_check_branch
      %54 = sbr.rel (%p52) target = $region29
    $region28: #{tpu_custom_call.1} parent=1 // pred_region
      %v55 = vld [vmem:[#allocation2] sm:$0xff]
      %v56 = vlaneseq
      %v57 = vand.u32 %v56, 127
      %vm58 = vcmp.lt.s32.totalorder %v57, 32
      %v59 = vld [vmem:[#allocation4] sm:$0xff]
      %v61 = vlaneseq
      %v62 = vshrl.u32 %v61, 7
      %v63 = vsub.s32 0, %v62
      %v64 = vrot.slane %v36, %v63
      %v66 = vmul.f32 %v59, %v64
      %v67 = vsel %vm58, %v66, 0.0
      %v68 = vadd.f32 %v55, %v67
      %69 = vst [vmem:[#allocation2] sm:$0xff] %v68
      %v70 = vld [vmem:[#allocation2] sm:$0xff]
      %71 = vadd.xlane.f32.xlu0 %v70
      %v72 = vpop.xlane.xlu0 %71
      %s73 = sld [smem:[#allocation3]]
      %v74 = vstv %s73
      %v75 = vadd.f32 %v72, %v74
      %vm76 = vcmask 7168
      %77 = vst.msk [vmem:[%s3] sm:$0xff] %vm76, %v75
    $region29: #{tpu_custom_call.1} parent=1 // pred_fallthru
      _
    // Predicated region
    $region30: #{tpu_custom_call.1} parent=1 // pred_check
      _
    $region31: #{tpu_custom_call.1} parent=1 // pred_check_branch
      %79 = sbr.rel (0) target = $region33
    $region32: #{tpu_custom_call.1} parent=1 // pred_region
      _
    $region33: #{tpu_custom_call.1} parent=1 // pred_fallthru
      _
    // Predicated region
    $region34: #{tpu_custom_call.1} parent=1 // pred_check
      _
    $region35: #{tpu_custom_call.1} parent=1 // pred_check_branch
      %81 = sbr.rel (0) target = $region37
    $region36: #{tpu_custom_call.1} parent=1 // pred_region
      _
    $region37: #{tpu_custom_call.1} parent=1 // pred_fallthru
      _
    %82 = vsyncpa [#allocation5], 1

</llo_original>
